<compile_context>
chip_gen: v7x
topology: tpu7x:2x2x1
jax: 0.10.0
libtpu: 0.0.40
codegen_flags: <defaults>
</compile_context>

<pallas_src>
import functools
import math

import jax
import jax.numpy as jnp
from jax import lax
from jax.experimental import pallas as pl
from jax.experimental.pallas import tpu as pltpu


def _equal_linear_kernel(x_ref, w_ref, w1_ref, b_ref,
                         out_ref, out1_ref,
                         acc_ref, acc1_ref,
                         *, scale, lr_mul):
    k = pl.program_id(2)

    @pl.when(k == 0)
    def _():
        acc_ref[...] = jnp.zeros_like(acc_ref)
        acc1_ref[...] = jnp.zeros_like(acc1_ref)

    x = x_ref[...]                     # (tm, tk): one load, reused by both matmuls
    dims = (((1,), (1,)), ((), ()))    # contract K of x with K of (N, K) weight
    acc_ref[...] += lax.dot_general(x, w_ref[...], dims,
                                    preferred_element_type=jnp.float32)
    acc1_ref[...] += lax.dot_general(x, w1_ref[...], dims,
                                     preferred_element_type=jnp.float32)

    @pl.when(k == pl.num_programs(2) - 1)
    def _():
        b = b_ref[...].astype(jnp.float32) * lr_mul          # (1, tn)
        out_ref[...] = (acc_ref[...] * scale + b).astype(out_ref.dtype)
        out1_ref[...] = (acc1_ref[...] * scale + b).astype(out1_ref.dtype)


def _pick(dim, tile):
    # Use the target tile if it divides the dim, else the full extent (always
    # a legal Pallas block).
    return tile if (dim >= tile and dim % tile == 0) else dim


def equal_linear(x, weight, weight1, bias=None, *, lr_mul=1.0,
                 tm=256, tn=256, tk=512):
    """x: (..., K); weight, weight1: (N, K); bias: (N,) or None."""
    N, K = weight.shape
    scale = 1.0 / math.sqrt(K) * lr_mul

    lead = x.shape[:-1]
    M = 1
    for d in lead:
        M *= d
    x2 = x.reshape(M, K)
    b2 = (bias if bias is not None else jnp.zeros((N,), x.dtype)).reshape(1, N)

    tm = _pick(M, tm)
    tn = _pick(N, tn)
    tk = _pick(K, tk)
    grid = (M // tm, N // tn, K // tk)

    kernel = functools.partial(_equal_linear_kernel,
                               scale=float(scale), lr_mul=float(lr_mul))

    out, out1 = pl.pallas_call(
        kernel,
        out_shape=(jax.ShapeDtypeStruct((M, N), x.dtype),
                   jax.ShapeDtypeStruct((M, N), x.dtype)),
        grid_spec=pltpu.PrefetchScalarGridSpec(
            num_scalar_prefetch=0,
            grid=grid,
            in_specs=[
                pl.BlockSpec((tm, tk), lambda i, j, k: (i, k)),   # x
                pl.BlockSpec((tn, tk), lambda i, j, k: (j, k)),   # weight
                pl.BlockSpec((tn, tk), lambda i, j, k: (j, k)),   # weight1
                pl.BlockSpec((1, tn), lambda i, j, k: (0, j)),    # bias
            ],
            out_specs=[
                pl.BlockSpec((tm, tn), lambda i, j, k: (i, j)),
                pl.BlockSpec((tm, tn), lambda i, j, k: (i, j)),
            ],
            scratch_shapes=[pltpu.VMEM((tm, tn), jnp.float32),
                            pltpu.VMEM((tm, tn), jnp.float32)],
        ),
        compiler_params=pltpu.CompilerParams(
            dimension_semantics=("parallel", "parallel", "arbitrary")),
    )(x2, weight, weight1, b2)

    return out.reshape(lead + (N,)), out1.reshape(lead + (N,))


if __name__ == "__main__":
    batch, seq = 2, 8
    in_channels, out_channels = 32, 32
    lr_mul = 1.0

    key = jax.random.PRNGKey(0)
    kx, kw, kw1 = jax.random.split(key, 3)

    x = jax.random.normal(kx, (batch, seq, in_channels), dtype=jnp.float32)
    # TODO(synk): torch.cuda.manual_seed(3/4) + torch.randn init cannot be
    # bit-matched in JAX; use deterministic jax.random.normal draws instead.
    weight = jax.random.normal(kw, (out_channels, in_channels),
                               dtype=jnp.float32) / lr_mul
    weight1 = jax.random.normal(kw1, (out_channels, in_channels),
                                dtype=jnp.float32) / lr_mul
    bias = jnp.zeros((out_channels,), jnp.float32)   # bias_init_val = 0

    out, out1 = equal_linear(x, weight, weight1, bias, lr_mul=lr_mul)
    jax.block_until_ready((out, out1))

    # Reference check (plain JAX, same semantics as the PyTorch forward).
    scale = 1.0 / math.sqrt(in_channels) * lr_mul
    ref = x @ (weight * scale).T + bias * lr_mul
    ref1 = x @ (weight1 * scale).T + bias * lr_mul
    assert out.shape == (batch, seq, out_channels)
    assert out1.shape == (batch, seq, out_channels)
    assert jnp.allclose(out, ref, atol=1e-5), "out mismatch vs reference"
    assert jnp.allclose(out1, ref1, atol=1e-5), "out1 mismatch vs reference"

    print("KERNEL_OK")
</pallas_src>

<mosaic_0001>
module attributes {stable_mosaic.version = 11 : i64} {
  func.func @_equal_linear_kernel(%arg0: i32, %arg1: i32, %arg2: i32, %arg3: memref<16x32xf32, #tpu.memory_space<vmem>>, %arg4: memref<32x32xf32, #tpu.memory_space<vmem>>, %arg5: memref<32x32xf32, #tpu.memory_space<vmem>>, %arg6: memref<1x32xf32, #tpu.memory_space<vmem>>, %arg7: memref<16x32xf32, #tpu.memory_space<vmem>>, %arg8: memref<16x32xf32, #tpu.memory_space<vmem>>, %arg9: memref<16x32xf32, #tpu.memory_space<vmem>>, %arg10: memref<16x32xf32, #tpu.memory_space<vmem>>) attributes {dimension_semantics = [#tpu.dimension_semantics<parallel>, #tpu.dimension_semantics<parallel>, #tpu.dimension_semantics<arbitrary>], iteration_bounds = array<i64: 1, 1, 1>, scalar_prefetch = 0 : i64, scratch_operands = 2 : i64, tpu.core_type = #tpu.core_type<tc>, window_params = [{transform_indices = @transform_0, window_bounds = array<i64: 16, 32>}, {transform_indices = @transform_1, window_bounds = array<i64: 32, 32>}, {transform_indices = @transform_2, window_bounds = array<i64: 32, 32>}, {transform_indices = @transform_3, window_bounds = array<i64: 1, 32>}, {transform_indices = @transform_4, window_bounds = array<i64: 16, 32>}, {transform_indices = @transform_5, window_bounds = array<i64: 16, 32>}]} {
    %c0_i32 = arith.constant 0 : i32
    %0 = arith.cmpi eq, %arg2, %c0_i32 : i32
    %1 = arith.extui %0 : i1 to i32
    %c0_i32_0 = arith.constant 0 : i32
    %2 = arith.cmpi ne, %1, %c0_i32_0 : i32
    scf.if %2 {
      %cst_17 = arith.constant 0.000000e+00 : f32
      %17 = vector.broadcast %cst_17 : f32 to vector<16x32xf32>
      %c0_18 = arith.constant 0 : index
      %c0_19 = arith.constant 0 : index
      %18 = vector.load %arg9[%c0_18, %c0_19] : memref<16x32xf32, #tpu.memory_space<vmem>>, vector<16x32xf32>
      tpu.vector_store %arg9[%c0_18, %c0_19], %17 {strides = array<i32>} : memref<16x32xf32, #tpu.memory_space<vmem>>, vector<16x32xf32>,
      %cst_20 = arith.constant 0.000000e+00 : f32
      %19 = vector.broadcast %cst_20 : f32 to vector<16x32xf32>
      %c0_21 = arith.constant 0 : index
      %c0_22 = arith.constant 0 : index
      %20 = vector.load %arg10[%c0_21, %c0_22] : memref<16x32xf32, #tpu.memory_space<vmem>>, vector<16x32xf32>
      tpu.vector_store %arg10[%c0_21, %c0_22], %19 {strides = array<i32>} : memref<16x32xf32, #tpu.memory_space<vmem>>, vector<16x32xf32>,
    } else {
    }
    %c0 = arith.constant 0 : index
    %c0_1 = arith.constant 0 : index
    %3 = vector.load %arg3[%c0, %c0_1] : memref<16x32xf32, #tpu.memory_space<vmem>>, vector<16x32xf32>
    %c0_2 = arith.constant 0 : index
    %c0_3 = arith.constant 0 : index
    %4 = vector.load %arg9[%c0_2, %c0_3] : memref<16x32xf32, #tpu.memory_space<vmem>>, vector<16x32xf32>
    %c0_4 = arith.constant 0 : index
    %c0_5 = arith.constant 0 : index
    %5 = vector.load %arg4[%c0_4, %c0_5] : memref<32x32xf32, #tpu.memory_space<vmem>>, vector<32x32xf32>
    %cst = arith.constant dense<0.000000e+00> : vector<16x32xf32>
    %6 = tpu.matmul %3, %5, %cst {dimension_numbers = #tpu.dot_dimension_numbers<[1], [1], [0], [0], [0, 0, 1, 0], [], []>} : vector<16x32xf32>, vector<32x32xf32>, vector<16x32xf32> -> vector<16x32xf32>
    %7 = arith.addf %4, %6 : vector<16x32xf32>
    %c0_6 = arith.constant 0 : index
    %c0_7 = arith.constant 0 : index
    %8 = vector.load %arg9[%c0_6, %c0_7] : memref<16x32xf32, #tpu.memory_space<vmem>>, vector<16x32xf32>
    tpu.vector_store %arg9[%c0_6, %c0_7], %7 {strides = array<i32>} : memref<16x32xf32, #tpu.memory_space<vmem>>, vector<16x32xf32>,
    %c0_8 = arith.constant 0 : index
    %c0_9 = arith.constant 0 : index
    %9 = vector.load %arg10[%c0_8, %c0_9] : memref<16x32xf32, #tpu.memory_space<vmem>>, vector<16x32xf32>
    %c0_10 = arith.constant 0 : index
    %c0_11 = arith.constant 0 : index
    %10 = vector.load %arg5[%c0_10, %c0_11] : memref<32x32xf32, #tpu.memory_space<vmem>>, vector<32x32xf32>
    %cst_12 = arith.constant dense<0.000000e+00> : vector<16x32xf32>
    %11 = tpu.matmul %3, %10, %cst_12 {dimension_numbers = #tpu.dot_dimension_numbers<[1], [1], [0], [0], [0, 0, 1, 0], [], []>} : vector<16x32xf32>, vector<32x32xf32>, vector<16x32xf32> -> vector<16x32xf32>
    %12 = arith.addf %9, %11 : vector<16x32xf32>
    %c0_13 = arith.constant 0 : index
    %c0_14 = arith.constant 0 : index
    %13 = vector.load %arg10[%c0_13, %c0_14] : memref<16x32xf32, #tpu.memory_space<vmem>>, vector<16x32xf32>
    tpu.vector_store %arg10[%c0_13, %c0_14], %12 {strides = array<i32>} : memref<16x32xf32, #tpu.memory_space<vmem>>, vector<16x32xf32>,
    %c0_i32_15 = arith.constant 0 : i32
    %14 = arith.cmpi eq, %arg2, %c0_i32_15 : i32
    %15 = arith.extui %14 : i1 to i32
    %c0_i32_16 = arith.constant 0 : i32
    %16 = arith.cmpi ne, %15, %c0_i32_16 : i32
    scf.if %16 {
      %c0_17 = arith.constant 0 : index
      %c0_18 = arith.constant 0 : index
      %17 = vector.load %arg6[%c0_17, %c0_18] : memref<1x32xf32, #tpu.memory_space<vmem>>, vector<1x32xf32>
      %cst_19 = arith.constant 1.000000e+00 : f32
      %18 = vector.broadcast %cst_19 : f32 to vector<1x32xf32>
      %19 = arith.mulf %17, %18 : vector<1x32xf32>
      %c0_20 = arith.constant 0 : index
      %c0_21 = arith.constant 0 : index
      %20 = vector.load %arg9[%c0_20, %c0_21] : memref<16x32xf32, #tpu.memory_space<vmem>>, vector<16x32xf32>
      %cst_22 = arith.constant 0.176776692 : f32
      %21 = vector.broadcast %cst_22 : f32 to vector<16x32xf32>
      %22 = arith.mulf %20, %21 : vector<16x32xf32>
      %23 = vector.broadcast %19 : vector<1x32xf32> to vector<16x32xf32>
      %24 = arith.addf %22, %23 : vector<16x32xf32>
      %c0_23 = arith.constant 0 : index
      %c0_24 = arith.constant 0 : index
      %25 = vector.load %arg7[%c0_23, %c0_24] : memref<16x32xf32, #tpu.memory_space<vmem>>, vector<16x32xf32>
      tpu.vector_store %arg7[%c0_23, %c0_24], %24 {strides = array<i32>} : memref<16x32xf32, #tpu.memory_space<vmem>>, vector<16x32xf32>,
      %c0_25 = arith.constant 0 : index
      %c0_26 = arith.constant 0 : index
      %26 = vector.load %arg10[%c0_25, %c0_26] : memref<16x32xf32, #tpu.memory_space<vmem>>, vector<16x32xf32>
      %cst_27 = arith.constant 0.176776692 : f32
      %27 = vector.broadcast %cst_27 : f32 to vector<16x32xf32>
      %28 = arith.mulf %26, %27 : vector<16x32xf32>
      %29 = vector.broadcast %19 : vector<1x32xf32> to vector<16x32xf32>
      %30 = arith.addf %28, %29 : vector<16x32xf32>
      %c0_28 = arith.constant 0 : index
      %c0_29 = arith.constant 0 : index
      %31 = vector.load %arg8[%c0_28, %c0_29] : memref<16x32xf32, #tpu.memory_space<vmem>>, vector<16x32xf32>
      tpu.vector_store %arg8[%c0_28, %c0_29], %30 {strides = array<i32>} : memref<16x32xf32, #tpu.memory_space<vmem>>, vector<16x32xf32>,
    } else {
    }
    return
  }
  func.func @transform_0(%arg0: i32, %arg1: i32, %arg2: i32) -> (i32, i32) {
    %c0_i32 = arith.constant 0 : i32
    return %arg0, %arg2 : i32, i32
  }
  func.func @transform_1(%arg0: i32, %arg1: i32, %arg2: i32) -> (i32, i32) {
    %c0_i32 = arith.constant 0 : i32
    return %arg1, %arg2 : i32, i32
  }
  func.func @transform_2(%arg0: i32, %arg1: i32, %arg2: i32) -> (i32, i32) {
    %c0_i32 = arith.constant 0 : i32
    return %arg1, %arg2 : i32, i32
  }
  func.func @transform_3(%arg0: i32, %arg1: i32, %arg2: i32) -> (i32, i32) {
    %c0_i32 = arith.constant 0 : i32
    %c0_i32_0 = arith.constant 0 : i32
    return %c0_i32, %arg1 : i32, i32
  }
  func.func @transform_4(%arg0: i32, %arg1: i32, %arg2: i32) -> (i32, i32) {
    %c0_i32 = arith.constant 0 : i32
    return %arg0, %arg1 : i32, i32
  }
  func.func @transform_5(%arg0: i32, %arg1: i32, %arg2: i32) -> (i32, i32) {
    %c0_i32 = arith.constant 0 : i32
    return %arg0, %arg1 : i32, i32
  }
}

</mosaic_0001>

<llo_original>
// kernel: tpu_custom_call.1
$region0: #{tpu_custom_call.1}
  #allocation0 [shape = 'u32[]', space=smem, size = 0x4, offset = 0x4, fixed_abs, tag = 'smem constant byte address 0x4 - core index']
  #allocation1 [shape = 'u32[144,128]{1,0:T(1,128)}', space=vmem, size = 0x12000, scoped, tag = 'internal scratch']
  #allocation2 [shape = 'f32[16,32]{1,0:T(8,128)}', space=vmem, size = 0x2000, scoped, tag = 'scratch operand']
  #allocation3 [shape = 'f32[16,32]{1,0:T(8,128)}', space=vmem, size = 0x2000, scoped, tag = 'scratch operand']
  %s0 = inlined_call_operand.hbm [shape: f32[16,32], index: 0, kind: input, shape index: {}]
  %s1 = inlined_call_operand.hbm [shape: f32[32,32], index: 1, kind: input, shape index: {}]
  %s2 = inlined_call_operand.hbm [shape: f32[32,32], index: 2, kind: input, shape index: {}]
  %s3 = inlined_call_operand.vmem [shape: f32[1,32], index: 3, kind: input, shape index: {}]
  %s4 = inlined_call_operand.hbm [shape: f32[16,32], index: 4, kind: output, shape index: {0}]
  %s5 = inlined_call_operand.hbm [shape: f32[16,32], index: 5, kind: output, shape index: {1}]
  %6 = xla_tuple %s4, %s5
  %s7 = sld [smem:[#allocation0]]
  $region54: #{tpu_custom_call.1} parent=0
    _
  %s9 = ssub.s32 1, %s7
  %s10 = scalar_select 0, %s9, %s7
  $region1: #{tpu_custom_call.1} parent=0
    #allocation4 [shape = 'u8[8192]{0}', space=vmem, size = 0x2000, scoped, tag = 'input window, operand 0, single buffered']
    #allocation5 [shape = 's32[1]{0}', space=sflag, size = 0x4, scoped, tag = 'scoped memory for tpu_custom_call.1']
    #allocation6 [shape = 's32[1]{0}', space=sflag, size = 0x4, scoped, tag = 'scoped memory for tpu_custom_call.1']
    #allocation7 [shape = 'u8[16384]{0}', space=vmem, size = 0x4000, scoped, tag = 'input window, operand 1, single buffered']
    #allocation8 [shape = 's32[1]{0}', space=sflag, size = 0x4, scoped, tag = 'scoped memory for tpu_custom_call.1']
    #allocation9 [shape = 'u8[16384]{0}', space=vmem, size = 0x4000, scoped, tag = 'input window, operand 2, single buffered']
    #allocation10 [shape = 'u8[8192]{0}', space=vmem, size = 0x2000, scoped, tag = 'output window, operand 0, single buffered']
    #allocation11 [shape = 'u8[8192]{0}', space=vmem, size = 0x2000, scoped, tag = 'output window, operand 1, single buffered']
    #allocation12 [shape = 's32[1]{0}', space=sflag, size = 0x4, scoped, tag = 'scoped memory for tpu_custom_call.1']
    %11 = vsyncpa [#allocation5], 0
    %12 = vsyncpa [#allocation8], 0
    %13 = vsyncpa [#allocation6], 0
    %14 = vsyncpa [#allocation12], 0
    // Predicated region
    $region2: #{tpu_custom_call.1} parent=1 // pred_check
      _
    $region3: #{tpu_custom_call.1} parent=1 // pred_check_branch
      %16 = sbr.rel (0) target = $region5
    $region4: #{tpu_custom_call.1} parent=1 // pred_region
      %s18 = ssub.s32 256, 256
      %19 = vsyncadd [#allocation5], %s18
      %s20 = sshll.u32 [#allocation4], 4
      %s21 = int_to_ptr.vmem [resolvable:$true] %s20
      %26 = dma.hbm_to_vmem [thread:$0]  %s0, 256, %s21, [#allocation5], 128, 128, 8
    $region5: #{tpu_custom_call.1} parent=1 // pred_fallthru
      _
    // Predicated region
    $region6: #{tpu_custom_call.1} parent=1 // pred_check
      _
    $region7: #{tpu_custom_call.1} parent=1 // pred_check_branch
      %28 = sbr.rel (0) target = $region9
    $region8: #{tpu_custom_call.1} parent=1 // pred_region
      %s30 = ssub.s32 512, 512
      %31 = vsyncadd [#allocation8], %s30
      %s32 = sshll.u32 [#allocation7], 4
      %s33 = int_to_ptr.vmem [resolvable:$true] %s32
      %38 = dma.hbm_to_vmem [thread:$0]  %s1, 512, %s33, [#allocation8], 128, 128, 8
    $region9: #{tpu_custom_call.1} parent=1 // pred_fallthru
      _
    // Predicated region
    $region10: #{tpu_custom_call.1} parent=1 // pred_check
      _
    $region11: #{tpu_custom_call.1} parent=1 // pred_check_branch
      %40 = sbr.rel (0) target = $region13
    $region12: #{tpu_custom_call.1} parent=1 // pred_region
      %s42 = ssub.s32 512, 512
      %43 = vsyncadd [#allocation8], %s42
      %s44 = sshll.u32 [#allocation9], 4
      %s45 = int_to_ptr.vmem [resolvable:$true] %s44
      %50 = dma.hbm_to_vmem [thread:$0]  %s2, 512, %s45, [#allocation8], 128, 128, 8
    $region13: #{tpu_custom_call.1} parent=1 // pred_fallthru
      _
    // Predicated region
    $region14: #{tpu_custom_call.1} parent=1 // pred_check
      _
    $region15: #{tpu_custom_call.1} parent=1 // pred_check_branch
      %52 = sbr.rel (0) target = $region17
    $region16: #{tpu_custom_call.1} parent=1 // pred_region
      _
    $region17: #{tpu_custom_call.1} parent=1 // pred_fallthru
      _
    // Predicated region
    $region18: #{tpu_custom_call.1} parent=1 // pred_check
      _
    $region19: #{tpu_custom_call.1} parent=1 // pred_check_branch
      %54 = sbr.rel (0) target = $region21
    $region20: #{tpu_custom_call.1} parent=1 // pred_region
      %55 = dma.done [#allocation5], 256
    $region21: #{tpu_custom_call.1} parent=1 // pred_fallthru
      _
    // Predicated region
    $region22: #{tpu_custom_call.1} parent=1 // pred_check
      _
    $region23: #{tpu_custom_call.1} parent=1 // pred_check_branch
      %57 = sbr.rel (0) target = $region25
    $region24: #{tpu_custom_call.1} parent=1 // pred_region
      %58 = dma.done [#allocation8], 512
    $region25: #{tpu_custom_call.1} parent=1 // pred_fallthru
      _
    // Predicated region
    $region26: #{tpu_custom_call.1} parent=1 // pred_check
      _
    $region27: #{tpu_custom_call.1} parent=1 // pred_check_branch
      %60 = sbr.rel (0) target = $region29
    $region28: #{tpu_custom_call.1} parent=1 // pred_region
      %61 = dma.done [#allocation8], 512
    $region29: #{tpu_custom_call.1} parent=1 // pred_fallthru
      _
    %p62 = scmp.eq.s32.totalorder 0, 0
    // Predicated region
    $region30: #{tpu_custom_call.1} parent=1 // pred_check
      %p63 = pneg %p62
    $region31: #{tpu_custom_call.1} parent=1 // pred_check_branch
      %65 = sbr.rel (%p63) target = $region33
    $region32: #{tpu_custom_call.1} parent=1 // pred_region
      %vm66 = vcmask 261120
      %67 = vst.msk [vmem:[#allocation2] sm:$0xff] %vm66, 0.0
      %68 = vst.msk [vmem:[#allocation2 + $0x8] sm:$0xff] %vm66, 0.0
      %69 = vst.msk [vmem:[#allocation3] sm:$0xff] %vm66, 0.0
      %70 = vst.msk [vmem:[#allocation3 + $0x8] sm:$0xff] %vm66, 0.0
    $region33: #{tpu_custom_call.1} parent=1 // pred_fallthru
      _
    %v71 = vld [vmem:[#allocation4] sm:$0xff]
    %v72 = vld [vmem:[#allocation4 + $0x8] sm:$0xff]
    %v73 = vld [vmem:[#allocation2] sm:$0xff]
    %v74 = vld [vmem:[#allocation2 + $0x8] sm:$0xff]
    %v75 = vld [vmem:[#allocation7] sm:$0xff]
    %v76 = vld [vmem:[#allocation7 + $0x8] sm:$0xff]
    %v77 = vld [vmem:[#allocation7 + $0x10] sm:$0xff]
    %v78 = vld [vmem:[#allocation7 + $0x18] sm:$0xff]
    %vm79 = vcmask 261120
    %v81 = vsel %vm79, %v71, 0
    %v84 = vsel %vm79, %v72, 0
    %v87 = vsel %vm79, %v75, 0
    %v90 = vsel %vm79, %v76, 0
    %v93 = vsel %vm79, %v77, 0
    %v96 = vsel %vm79, %v78, 0
    %98 = vmatprep.subr.mxu0 0.0
    %99 = vmatpush1.xpose.msra.mxu0 %v87
    %100 = vmatprep.subr.mxu0 0.0
    %101 = vmatpush1.xpose.msra.mxu0 %v90
    %102 = vmatprep.subr.mxu0 0.0
    %103 = vmatpush1.xpose.msra.mxu0 %v93
    %104 = vmatprep.subr.mxu0 0.0
    %105 = vmatpush1.xpose.msra.mxu0 %v96
    %106 = vmatprep.subr.mxu0 0.0
    %107 = vmatpush1.xpose.msra.mxu0 0.0
    %108 = vmatprep.subr.mxu0 0.0
    %109 = vmatpush1.xpose.msra.mxu0 0.0
    %110 = vmatprep.subr.mxu0 0.0
    %111 = vmatpush1.xpose.msra.mxu0 0.0
    %112 = vmatprep.subr.mxu0 0.0
    %113 = vmatpush1.xpose.msra.mxu0 0.0
    %114 = vmatprep.subr.mxu0 0.0
    %115 = vmatpush1.xpose.msra.mxu0 0.0
    %116 = vmatprep.subr.mxu0 0.0
    %117 = vmatpush1.xpose.msra.mxu0 0.0
    %118 = vmatprep.subr.mxu0 0.0
    %119 = vmatpush1.xpose.msra.mxu0 0.0
    %120 = vmatprep.subr.mxu0 0.0
    %121 = vmatpush1.xpose.msra.mxu0 0.0
    %122 = vmatprep.subr.mxu0 0.0
    %123 = vmatpush1.xpose.msra.mxu0 0.0
    %124 = vmatprep.subr.mxu0 0.0
    %125 = vmatpush1.xpose.msra.mxu0 0.0
    %126 = vmatprep.subr.mxu0 0.0
    %127 = vmatpush1.xpose.msra.mxu0 0.0
    %128 = vmatprep.subr.mxu0 0.0
    %129 = vmatpush1.xpose.msra.mxu0 0.0
    %130 = vmatprep.subr.mxu0 0.0
    %131 = vmatpush1.xpose.msra.mxu0 0.0
    %132 = vmatprep.subr.mxu0 0.0
    %133 = vmatpush1.xpose.msra.mxu0 0.0
    %134 = vmatprep.subr.mxu0 0.0
    %135 = vmatpush1.xpose.msra.mxu0 0.0
    %136 = vmatprep.subr.mxu0 0.0
    %137 = vmatpush1.xpose.msra.mxu0 0.0
    %138 = vmatprep.subr.mxu0 0.0
    %139 = vmatpush1.xpose.msra.mxu0 0.0
    %140 = vmatprep.subr.mxu0 0.0
    %141 = vmatpush1.xpose.msra.mxu0 0.0
    %142 = vmatprep.subr.mxu0 0.0
    %143 = vmatpush1.xpose.msra.mxu0 0.0
    %144 = vmatprep.subr.mxu0 0.0
    %145 = vmatpush1.xpose.msra.mxu0 0.0
    %146 = vmatprep.subr.mxu0 0.0
    %147 = vmatpush1.xpose.msra.mxu0 0.0
    %148 = vmatprep.subr.mxu0 0.0
    %149 = vmatpush1.xpose.msra.mxu0 0.0
    %150 = vmatprep.subr.mxu0 0.0
    %151 = vmatpush1.xpose.msra.mxu0 0.0
    %152 = vmatprep.subr.mxu0 0.0
    %153 = vmatpush1.xpose.msra.mxu0 0.0
    %154 = vmatprep.subr.mxu0 0.0
    %155 = vmatpush1.xpose.msra.mxu0 0.0
    %156 = vmatprep.subr.mxu0 0.0
    %157 = vmatpush1.xpose.msra.mxu0 0.0
    %158 = vmatprep.subr.mxu0 0.0
    %159 = vmatpush1.xpose.msra.mxu0 0.0
    %160 = vmatprep.subr.mxu0 0.0
    %161 = vmatpush1.xpose.msra.mxu0 0.0
    %162 = vmatprep.mubr.f32.mxu0 0.0
    %163 = vmatmul.mubr.f32.gmra.mrb[0].mxu0 %v81
    %v164 = vpop.f32.mrb[0].mxu0
    %v165 = vadd.f32 0.0, %v164
    %v166 = vpop.f32.mrb[0].mxu0
    %167 = vmatprep.mubr.f32.mxu0 0.0
    %168 = vmatmul.mubr.f32.gmra.mrb[0].mxu0 %v84
    %v169 = vpop.f32.mrb[0].mxu0
    %v170 = vadd.f32 0.0, %v169
    %v171 = vpop.f32.mrb[0].mxu0
    %172 = vdwg.mxu0
    %v173 = vadd.f32 %v73, %v165
    %v174 = vadd.f32 %v74, %v170
    %175 = vst.msk [vmem:[#allocation2] sm:$0xff] %vm79, %v173
    %176 = vst.msk [vmem:[#allocation2 + $0x8] sm:$0xff] %vm79, %v174
    %v177 = vld [vmem:[#allocation3] sm:$0xff]
    %v178 = vld [vmem:[#allocation3 + $0x8] sm:$0xff]
    %v179 = vld [vmem:[#allocation9] sm:$0xff]
    %v180 = vld [vmem:[#allocation9 + $0x8] sm:$0xff]
    %v181 = vld [vmem:[#allocation9 + $0x10] sm:$0xff]
    %v182 = vld [vmem:[#allocation9 + $0x18] sm:$0xff]
    %v184 = vsel %vm79, %v179, 0
    %v187 = vsel %vm79, %v180, 0
    %v190 = vsel %vm79, %v181, 0
    %v193 = vsel %vm79, %v182, 0
    %195 = vmatprep.subr.mxu0 0.0
    %196 = vmatpush1.xpose.msra.mxu0 %v184
    %197 = vmatprep.subr.mxu0 0.0
    %198 = vmatpush1.xpose.msra.mxu0 %v187
    %199 = vmatprep.subr.mxu0 0.0
    %200 = vmatpush1.xpose.msra.mxu0 %v190
    %201 = vmatprep.subr.mxu0 0.0
    %202 = vmatpush1.xpose.msra.mxu0 %v193
    %203 = vmatprep.subr.mxu0 0.0
    %204 = vmatpush1.xpose.msra.mxu0 0.0
    %205 = vmatprep.subr.mxu0 0.0
    %206 = vmatpush1.xpose.msra.mxu0 0.0
    %207 = vmatprep.subr.mxu0 0.0
    %208 = vmatpush1.xpose.msra.mxu0 0.0
    %209 = vmatprep.subr.mxu0 0.0
    %210 = vmatpush1.xpose.msra.mxu0 0.0
    %211 = vmatprep.subr.mxu0 0.0
    %212 = vmatpush1.xpose.msra.mxu0 0.0
    %213 = vmatprep.subr.mxu0 0.0
    %214 = vmatpush1.xpose.msra.mxu0 0.0
    %215 = vmatprep.subr.mxu0 0.0
    %216 = vmatpush1.xpose.msra.mxu0 0.0
    %217 = vmatprep.subr.mxu0 0.0
    %218 = vmatpush1.xpose.msra.mxu0 0.0
    %219 = vmatprep.subr.mxu0 0.0
    %220 = vmatpush1.xpose.msra.mxu0 0.0
    %221 = vmatprep.subr.mxu0 0.0
    %222 = vmatpush1.xpose.msra.mxu0 0.0
    %223 = vmatprep.subr.mxu0 0.0
    %224 = vmatpush1.xpose.msra.mxu0 0.0
    %225 = vmatprep.subr.mxu0 0.0
    %226 = vmatpush1.xpose.msra.mxu0 0.0
    %227 = vmatprep.subr.mxu0 0.0
    %228 = vmatpush1.xpose.msra.mxu0 0.0
    %229 = vmatprep.subr.mxu0 0.0
    %230 = vmatpush1.xpose.msra.mxu0 0.0
    %231 = vmatprep.subr.mxu0 0.0
    %232 = vmatpush1.xpose.msra.mxu0 0.0
    %233 = vmatprep.subr.mxu0 0.0
    %234 = vmatpush1.xpose.msra.mxu0 0.0
    %235 = vmatprep.subr.mxu0 0.0
    %236 = vmatpush1.xpose.msra.mxu0 0.0
    %237 = vmatprep.subr.mxu0 0.0
    %238 = vmatpush1.xpose.msra.mxu0 0.0
    %239 = vmatprep.subr.mxu0 0.0
    %240 = vmatpush1.xpose.msra.mxu0 0.0
    %241 = vmatprep.subr.mxu0 0.0
    %242 = vmatpush1.xpose.msra.mxu0 0.0
    %243 = vmatprep.subr.mxu0 0.0
    %244 = vmatpush1.xpose.msra.mxu0 0.0
    %245 = vmatprep.subr.mxu0 0.0
    %246 = vmatpush1.xpose.msra.mxu0 0.0
    %247 = vmatprep.subr.mxu0 0.0
    %248 = vmatpush1.xpose.msra.mxu0 0.0
    %249 = vmatprep.subr.mxu0 0.0
    %250 = vmatpush1.xpose.msra.mxu0 0.0
    %251 = vmatprep.subr.mxu0 0.0
    %252 = vmatpush1.xpose.msra.mxu0 0.0
    %253 = vmatprep.subr.mxu0 0.0
    %254 = vmatpush1.xpose.msra.mxu0 0.0
    %255 = vmatprep.subr.mxu0 0.0
    %256 = vmatpush1.xpose.msra.mxu0 0.0
    %257 = vmatprep.subr.mxu0 0.0
    %258 = vmatpush1.xpose.msra.mxu0 0.0
    %259 = vmatprep.mubr.f32.mxu0 0.0
    %260 = vmatmul.mubr.f32.gmra.mrb[0].mxu0 %v81
    %v261 = vpop.f32.mrb[0].mxu0
    %v262 = vadd.f32 0.0, %v261
    %v263 = vpop.f32.mrb[0].mxu0
    %264 = vmatprep.mubr.f32.mxu0 0.0
    %265 = vmatmul.mubr.f32.gmra.mrb[0].mxu0 %v84
    %v266 = vpop.f32.mrb[0].mxu0
    %v267 = vadd.f32 0.0, %v266
    %v268 = vpop.f32.mrb[0].mxu0
    %269 = vdwg.mxu0
    %v270 = vadd.f32 %v177, %v262
    %v271 = vadd.f32 %v178, %v267
    %272 = vst.msk [vmem:[#allocation3] sm:$0xff] %vm79, %v270
    %273 = vst.msk [vmem:[#allocation3 + $0x8] sm:$0xff] %vm79, %v271
    // Predicated region
    $region34: #{tpu_custom_call.1} parent=1 // pred_check
      %p274 = pneg %p62
    $region35: #{tpu_custom_call.1} parent=1 // pred_check_branch
      %276 = sbr.rel (%p274) target = $region37
    $region36: #{tpu_custom_call.1} parent=1 // pred_region
      %v277 = vld [vmem:[%s3] sm:$0x1]
      %v278 = vld [vmem:[#allocation2] sm:$0xff]
      %v279 = vld [vmem:[#allocation2 + $0x8] sm:$0xff]
      %v280 = vmul.f32 %v278, 0.17677669
      %v281 = vmul.f32 %v279, 0.17677669
      %v283 = vlaneseq
      %v284 = vshrl.u32 %v283, 7
      %v285 = vsub.s32 0, %v284
      %v286 = vrot.slane %v277, %v285
      %v288 = vadd.f32 %v280, %v286
      %v289 = vadd.f32 %v281, %v286
      %290 = vst.msk [vmem:[#allocation10] sm:$0xff] %vm79, %v288
      %291 = vst.msk [vmem:[#allocation10 + $0x8] sm:$0xff] %vm79, %v289
      %v292 = vld [vmem:[#allocation3] sm:$0xff]
      %v293 = vld [vmem:[#allocation3 + $0x8] sm:$0xff]
      %v294 = vmul.f32 %v292, 0.17677669
      %v295 = vmul.f32 %v293, 0.17677669
      %v296 = vadd.f32 %v294, %v286
      %v297 = vadd.f32 %v295, %v286
      %298 = vst.msk [vmem:[#allocation11] sm:$0xff] %vm79, %v296
      %299 = vst.msk [vmem:[#allocation11 + $0x8] sm:$0xff] %vm79, %v297
    $region37: #{tpu_custom_call.1} parent=1 // pred_fallthru
      _
    // Predicated region
    $region38: #{tpu_custom_call.1} parent=1 // pred_check
      _
    $region39: #{tpu_custom_call.1} parent=1 // pred_check_branch
      %301 = sbr.rel (0) target = $region41
    $region40: #{tpu_custom_call.1} parent=1 // pred_region
      %s303 = ssub.s32 256, 256
      %304 = vsyncadd [#allocation6], %s303
      %s305 = sshll.u32 [#allocation10], 4
      %s306 = int_to_ptr.vmem [resolvable:$true] %s305
      %311 = dma.vmem_to_hbm [thread:$0]  %s306, 256, %s4, [#allocation6], 128, 128, 8
    $region41: #{tpu_custom_call.1} parent=1 // pred_fallthru
      _
    // Predicated region
    $region42: #{tpu_custom_call.1} parent=1 // pred_check
      _
    $region43: #{tpu_custom_call.1} parent=1 // pred_check_branch
      %313 = sbr.rel (0) target = $region45
    $region44: #{tpu_custom_call.1} parent=1 // pred_region
      %s315 = ssub.s32 256, 256
      %316 = vsyncadd [#allocation12], %s315
      %s317 = sshll.u32 [#allocation11], 4
      %s318 = int_to_ptr.vmem [resolvable:$true] %s317
      %323 = dma.vmem_to_hbm [thread:$0]  %s318, 256, %s5, [#allocation12], 128, 128, 8
    $region45: #{tpu_custom_call.1} parent=1 // pred_fallthru
      _
    // Predicated region
    $region46: #{tpu_custom_call.1} parent=1 // pred_check
      _
    $region47: #{tpu_custom_call.1} parent=1 // pred_check_branch
      %325 = sbr.rel (0) target = $region49
    $region48: #{tpu_custom_call.1} parent=1 // pred_region
      %326 = dma.done [#allocation6], 256
    $region49: #{tpu_custom_call.1} parent=1 // pred_fallthru
      _
    // Predicated region
    $region50: #{tpu_custom_call.1} parent=1 // pred_check
      _
    $region51: #{tpu_custom_call.1} parent=1 // pred_check_branch
      %328 = sbr.rel (0) target = $region53
    $region52: #{tpu_custom_call.1} parent=1 // pred_region
      %329 = dma.done [#allocation12], 256
    $region53: #{tpu_custom_call.1} parent=1 // pred_fallthru
      _
    %330 = vsyncpa [#allocation5], 1
    %331 = vsyncpa [#allocation8], 1
    %332 = vsyncpa [#allocation6], 1
    %333 = vsyncpa [#allocation12], 1

</llo_original>
